<compile_context>
chip_gen: v6e
topology: v6e:2x2x1
jax: 0.10.0
libtpu: 0.0.40
codegen_flags: <defaults>
</compile_context>

<pallas_src>
import jax
import jax.numpy as jnp
from jax.experimental import pallas as pl
from jax.experimental.pallas import tpu as pltpu

LANES = 128
SUBLANES = 8
_INNER_MAX = 1024  # rows per inner sub-chunk (512 KiB of f32 temporaries max)


def _device_kind():
    try:
        return jax.devices()[0].device_kind.lower()
    except Exception:
        return ""


def _num_tensorcores():
    kind = _device_kind()
    # Megacore chips (2 TensorCores driven by one Pallas program): v4, v5p, v7x.
    if any(tag in kind for tag in ("v4", "v5p", "v7", "7x")):
        return 2
    return 1


def _default_tile_bytes():
    kind = _device_kind()
    # v5e: only 16 MiB default scoped VMEM and slower HBM -> 2 MiB per buffer.
    if "v5" in kind and "v5p" not in kind:
        return 2 << 20
    # v6e / v7x / default: 4 MiB per input per buffer (8192 f32 rows).
    return 4 << 20


def _make_rmse_kernel(rows, tile_rows, inner_rows, steps_per_core, total_steps,
                      ncores, has_tail, has_dup):
    n_inner = tile_rows // inner_rows
    chunks = inner_rows // SUBLANES

    def kernel(p_ref, r_ref, o_ref):
        i = pl.program_id(1)

        @pl.when(i == 0)
        def _init():
            o_ref[...] = jnp.zeros_like(o_ref)

        blk = pl.program_id(0) * steps_per_core + i if ncores > 1 else i

        def accumulate(masked):
            # Stream the tile in <=1024-row sub-chunks read directly from the
            # refs, accumulating into a single (8,128) vreg-sized carry so no
            # tile-sized f32 temporaries get materialized in VMEM.
            def body(c, acc):
                start = pl.multiple_of(c * inner_rows, inner_rows)
                p = p_ref[pl.ds(start, inner_rows), :].astype(jnp.float32)
                r = r_ref[pl.ds(start, inner_rows), :].astype(jnp.float32)
                d = p - r
                sq = d * d
                if masked:
                    # Only compiled for (and executed on) the partial tail
                    # block; zero rows past the logical end of the data.
                    row0 = blk * tile_rows + c * inner_rows
                    row_idx = row0 + jax.lax.broadcasted_iota(
                        jnp.int32, (inner_rows, LANES), 0)
                    sq = jnp.where(row_idx < rows, sq, 0.0)
                return acc + jnp.sum(sq.reshape(chunks, SUBLANES, LANES), axis=0)

            acc = jax.lax.fori_loop(
                0, n_inner, body,
                jnp.zeros((SUBLANES, LANES), jnp.float32),
                unroll=True)
            o_ref[...] += acc

        if not has_tail and not has_dup:
            # Hot path: every block is full and in range -> no masking at all.
            accumulate(False)
        else:
            full_blocks = total_steps - 1 if has_tail else total_steps

            @pl.when(blk < full_blocks)
            def _full():
                accumulate(False)

            if has_tail:
                @pl.when(blk == total_steps - 1)
                def _tail():
                    accumulate(True)
            # Blocks with blk >= total_steps are fully-clamped duplicates on
            # the second core: skipped entirely, they contribute nothing.

    return kernel


def _sumsq_pallas(p2, r2, rows, tile_rows, ncores):
    total_steps = -(-rows // tile_rows)
    steps_per_core = -(-total_steps // ncores)
    has_tail = rows % tile_rows != 0
    has_dup = ncores * steps_per_core > total_steps

    inner_rows = min(tile_rows, _INNER_MAX)

    def in_map(c, i):
        # Clamp so the DMA never targets a fully out-of-range block; the
        # in-kernel pl.when skips the duplicated blocks' accumulation.
        return (jnp.minimum(c * steps_per_core + i, total_steps - 1), 0)

    kernel = _make_rmse_kernel(rows, tile_rows, inner_rows, steps_per_core,
                               total_steps, ncores, has_tail, has_dup)

    itemsize = p2.dtype.itemsize
    in_buf_bytes = 2 * 2 * tile_rows * LANES * itemsize  # 2 inputs x 2 buffers
    vmem_limit = int(min(48 << 20, in_buf_bytes + (16 << 20)))

    partials = pl.pallas_call(
        kernel,
        out_shape=jax.ShapeDtypeStruct((ncores * SUBLANES, LANES), jnp.float32),
        grid_spec=pltpu.PrefetchScalarGridSpec(
            num_scalar_prefetch=0,
            grid=(ncores, steps_per_core),
            in_specs=[
                pl.BlockSpec((tile_rows, LANES), in_map),
                pl.BlockSpec((tile_rows, LANES), in_map),
            ],
            out_specs=pl.BlockSpec((SUBLANES, LANES), lambda c, i: (c, 0)),
        ),
        compiler_params=pltpu.CompilerParams(
            dimension_semantics=("parallel", "arbitrary"),
            vmem_limit_bytes=vmem_limit,
        ),
    )(p2, r2)

    return jnp.sum(partials)


def rmse(pred, real, *, tile_rows=None):
    assert pred.shape == real.shape, (pred.shape, real.shape)
    n = pred.size

    pf = jnp.ravel(pred)
    rf = jnp.ravel(real)

    itemsize = pred.dtype.itemsize
    # Minimum legal sublane multiple for the input dtype's block tile.
    sub_mult = {4: SUBLANES, 2: 2 * SUBLANES, 1: 4 * SUBLANES}.get(itemsize, SUBLANES)
    align = sub_mult * LANES

    # No jnp.pad: kernel handles the aligned prefix, plain JAX handles the
    # (< align elements) ragged tail.
    n_main = (n // align) * align

    total = jnp.float32(0.0)

    if n_main:
        rows = n_main // LANES
        p2 = pf[:n_main].reshape(rows, LANES)
        r2 = rf[:n_main].reshape(rows, LANES)

        ncores = _num_tensorcores()

        if tile_rows is None:
            tile_rows = _default_tile_bytes() // (LANES * itemsize)
        tile_rows = max(sub_mult, min(tile_rows, rows))
        if tile_rows >= _INNER_MAX:
            tile_rows = (tile_rows // _INNER_MAX) * _INNER_MAX
        else:
            tile_rows = (tile_rows // sub_mult) * sub_mult

        total = total + _sumsq_pallas(p2, r2, rows, tile_rows, ncores)

    if n_main < n:
        tp = pf[n_main:].astype(jnp.float32)
        tr = rf[n_main:].astype(jnp.float32)
        total = total + jnp.sum((tp - tr) ** 2)

    # Final mean + sqrt outside the kernel (scalar-sized, cheap).
    return jnp.sqrt(total / jnp.float32(n))


if __name__ == "__main__":
    key = jax.random.PRNGKey(0)
    k1, k2 = jax.random.split(key)
    # Small NCHW-shaped inputs (batch=2, channels=4, spatial=16x16).
    pred = jax.random.normal(k1, (2, 4, 16, 16), dtype=jnp.float32)
    real = jax.random.normal(k2, (2, 4, 16, 16), dtype=jnp.float32)

    loss = rmse(pred, real)
    jax.block_until_ready(loss)

    # Reference check in plain JAX.
    ref = jnp.sqrt(jnp.mean((pred - real) ** 2))
    assert jnp.allclose(loss, ref, rtol=1e-5, atol=1e-6), (loss, ref)

    print("KERNEL_OK")
</pallas_src>

<mosaic_0001>
module attributes {stable_mosaic.version = 11 : i64} {
  func.func @kernel(%arg0: i32, %arg1: i32, %arg2: memref<16x128xf32, #tpu.memory_space<vmem>>, %arg3: memref<16x128xf32, #tpu.memory_space<vmem>>, %arg4: memref<8x128xf32, #tpu.memory_space<vmem>>) attributes {dimension_semantics = [#tpu.dimension_semantics<parallel>, #tpu.dimension_semantics<arbitrary>], iteration_bounds = array<i64: 1, 1>, scalar_prefetch = 0 : i64, scratch_operands = 0 : i64, tpu.core_type = #tpu.core_type<tc>, window_params = [{transform_indices = @transform_0, window_bounds = array<i64: 16, 128>}, {transform_indices = @transform_1, window_bounds = array<i64: 16, 128>}, {transform_indices = @transform_2, window_bounds = array<i64: 8, 128>}]} {
    %c0_i32 = arith.constant 0 : i32
    %0 = arith.cmpi eq, %arg1, %c0_i32 : i32
    %1 = arith.extui %0 : i1 to i32
    %c0_i32_0 = arith.constant 0 : i32
    %2 = arith.cmpi ne, %1, %c0_i32_0 : i32
    scf.if %2 {
      %cst_8 = arith.constant 0.000000e+00 : f32
      %18 = vector.broadcast %cst_8 : f32 to vector<8x128xf32>
      %c0_9 = arith.constant 0 : index
      %c0_10 = arith.constant 0 : index
      %19 = vector.load %arg4[%c0_9, %c0_10] : memref<8x128xf32, #tpu.memory_space<vmem>>, vector<8x128xf32>
      tpu.vector_store %arg4[%c0_9, %c0_10], %18 {strides = array<i32>} : memref<8x128xf32, #tpu.memory_space<vmem>>, vector<8x128xf32>,
    } else {
    }
    %cst = arith.constant 0.000000e+00 : f32
    %3 = vector.broadcast %cst : f32 to vector<8x128xf32>
    %c0_i32_1 = arith.constant 0 : i32
    %c16_i32 = arith.constant 16 : i32
    %4 = arith.muli %c0_i32_1, %c16_i32 : i32
    %5 = tpu.assume_multiple %4, 16 : i32
    %6 = arith.index_cast %5 : i32 to index
    %c0 = arith.constant 0 : index
    %7 = vector.load %arg2[%6, %c0] : memref<16x128xf32, #tpu.memory_space<vmem>>, vector<16x128xf32>
    %8 = arith.index_cast %5 : i32 to index
    %c0_2 = arith.constant 0 : index
    %9 = vector.load %arg3[%8, %c0_2] : memref<16x128xf32, #tpu.memory_space<vmem>>, vector<16x128xf32>
    %10 = arith.subf %7, %9 : vector<16x128xf32>
    %11 = arith.mulf %10, %10 : vector<16x128xf32>
    %12 = vector.shape_cast %11 : vector<16x128xf32> to vector<2x8x128xf32>
    %cst_3 = arith.constant dense<0.000000e+00> : vector<8x128xf32>
    %13 = vector.multi_reduction <add>, %12, %cst_3 [0] : vector<2x8x128xf32> to vector<8x128xf32>
    %14 = arith.addf %3, %13 : vector<8x128xf32>
    %c1_i32 = arith.constant 1 : i32
    %c0_4 = arith.constant 0 : index
    %c0_5 = arith.constant 0 : index
    %15 = vector.load %arg4[%c0_4, %c0_5] : memref<8x128xf32, #tpu.memory_space<vmem>>, vector<8x128xf32>
    %16 = arith.addf %15, %14 : vector<8x128xf32>
    %c0_6 = arith.constant 0 : index
    %c0_7 = arith.constant 0 : index
    %17 = vector.load %arg4[%c0_6, %c0_7] : memref<8x128xf32, #tpu.memory_space<vmem>>, vector<8x128xf32>
    tpu.vector_store %arg4[%c0_6, %c0_7], %16 {strides = array<i32>} : memref<8x128xf32, #tpu.memory_space<vmem>>, vector<8x128xf32>,
    return
  }
  func.func @transform_0(%arg0: i32, %arg1: i32) -> (i32, i32) {
    %c1_i32 = arith.constant 1 : i32
    %0 = arith.muli %arg0, %c1_i32 : i32
    %1 = arith.addi %0, %arg1 : i32
    %c0_i32 = arith.constant 0 : i32
    %2 = arith.minsi %1, %c0_i32 : i32
    %c0_i32_0 = arith.constant 0 : i32
    %c0_i32_1 = arith.constant 0 : i32
    return %2, %c0_i32_0 : i32, i32
  }
  func.func @transform_1(%arg0: i32, %arg1: i32) -> (i32, i32) {
    %c1_i32 = arith.constant 1 : i32
    %0 = arith.muli %arg0, %c1_i32 : i32
    %1 = arith.addi %0, %arg1 : i32
    %c0_i32 = arith.constant 0 : i32
    %2 = arith.minsi %1, %c0_i32 : i32
    %c0_i32_0 = arith.constant 0 : i32
    %c0_i32_1 = arith.constant 0 : i32
    return %2, %c0_i32_0 : i32, i32
  }
  func.func @transform_2(%arg0: i32, %arg1: i32) -> (i32, i32) {
    %c0_i32 = arith.constant 0 : i32
    %c0_i32_0 = arith.constant 0 : i32
    return %arg0, %c0_i32 : i32, i32
  }
}

</mosaic_0001>

<llo_original>
// kernel: tpu_custom_call.1
$region0: #{tpu_custom_call.1}
  #allocation0 [shape = 'u32[]', space=smem, size = 0x4, offset = 0x4, fixed_abs, tag = 'smem constant byte address 0x4 - core index']
  #allocation1 [shape = 'u32[144,128]{1,0:T(1,128)}', space=vmem, size = 0x12000, scoped, tag = 'internal scratch']
  %s0 = inlined_call_operand.hbm [shape: f32[16,128], index: 0, kind: input, shape index: {}]
  %s1 = inlined_call_operand.hbm [shape: f32[16,128], index: 1, kind: input, shape index: {}]
  %s2 = inlined_call_operand.hbm [shape: f32[8,128], index: 2, kind: output, shape index: {}]
  %s3 = sld [smem:[#allocation0]]
  $region30: #{tpu_custom_call.1} parent=0
    _
  %s5 = ssub.s32 1, %s3
  %s6 = scalar_select 0, %s5, %s3
  $region1: #{tpu_custom_call.1} parent=0
    #allocation2 [shape = 'u8[8192]{0}', space=vmem, size = 0x2000, scoped, tag = 'input window, operand 0, single buffered']
    #allocation3 [shape = 's32[1]{0}', space=sflag, size = 0x4, scoped, tag = 'scoped memory for tpu_custom_call.1']
    #allocation4 [shape = 's32[1]{0}', space=sflag, size = 0x4, scoped, tag = 'scoped memory for tpu_custom_call.1']
    #allocation5 [shape = 'u8[8192]{0}', space=vmem, size = 0x2000, scoped, tag = 'input window, operand 1, single buffered']
    #allocation6 [shape = 's32[1]{0}', space=sflag, size = 0x4, scoped, tag = 'scoped memory for tpu_custom_call.1']
    #allocation7 [shape = 'u8[4096]{0}', space=vmem, size = 0x1000, scoped, tag = 'output window, operand 0, single buffered']
    %7 = vsyncpa [#allocation3], 0
    %8 = vsyncpa [#allocation6], 0
    %9 = vsyncpa [#allocation4], 0
    // Predicated region
    $region2: #{tpu_custom_call.1} parent=1 // pred_check
      _
    $region3: #{tpu_custom_call.1} parent=1 // pred_check_branch
      %11 = sbr.rel (0) target = $region5
    $region4: #{tpu_custom_call.1} parent=1 // pred_region
      %s12 = sadd.s32 0, 0
      %p13 = scmp.lt.s32.totalorder %s12, 0
      %s14 = scalar_select %p13, %s12, 0
      %s15 = smul.u32 2, %s14
      %s17 = ssub.s32 256, 256
      %18 = vsyncadd [#allocation3], %s17
      %s19 = smul.addr %s15, 128
      %s20 = scalar_lea.hbm %s0, %s19
      %s21 = sshll.u32 [#allocation2], 4
      %s22 = int_to_ptr.vmem [resolvable:$true] %s21
      %27 = dma.hbm_to_vmem [thread:$0]  %s20, 256, %s22, [#allocation3], 128, 128, 8
    $region5: #{tpu_custom_call.1} parent=1 // pred_fallthru
      _
    // Predicated region
    $region6: #{tpu_custom_call.1} parent=1 // pred_check
      _
    $region7: #{tpu_custom_call.1} parent=1 // pred_check_branch
      %29 = sbr.rel (0) target = $region9
    $region8: #{tpu_custom_call.1} parent=1 // pred_region
      %s30 = sadd.s32 0, 0
      %p31 = scmp.lt.s32.totalorder %s30, 0
      %s32 = scalar_select %p31, %s30, 0
      %s33 = smul.u32 2, %s32
      %s35 = ssub.s32 256, 256
      %36 = vsyncadd [#allocation6], %s35
      %s37 = smul.addr %s33, 128
      %s38 = scalar_lea.hbm %s1, %s37
      %s39 = sshll.u32 [#allocation5], 4
      %s40 = int_to_ptr.vmem [resolvable:$true] %s39
      %45 = dma.hbm_to_vmem [thread:$0]  %s38, 256, %s40, [#allocation6], 128, 128, 8
    $region9: #{tpu_custom_call.1} parent=1 // pred_fallthru
      _
    // Predicated region
    $region10: #{tpu_custom_call.1} parent=1 // pred_check
      _
    $region11: #{tpu_custom_call.1} parent=1 // pred_check_branch
      %47 = sbr.rel (0) target = $region13
    $region12: #{tpu_custom_call.1} parent=1 // pred_region
      %48 = dma.done [#allocation3], 256
    $region13: #{tpu_custom_call.1} parent=1 // pred_fallthru
      _
    // Predicated region
    $region14: #{tpu_custom_call.1} parent=1 // pred_check
      _
    $region15: #{tpu_custom_call.1} parent=1 // pred_check_branch
      %50 = sbr.rel (0) target = $region17
    $region16: #{tpu_custom_call.1} parent=1 // pred_region
      %51 = dma.done [#allocation6], 256
    $region17: #{tpu_custom_call.1} parent=1 // pred_fallthru
      _
    %s52 = sadd.s32 0, 0
    %p53 = scmp.lt.s32.totalorder %s52, 0
    %s54 = scalar_select %p53, %s52, 0
    %s55 = smul.u32 2, %s54
    %s56 = sadd.s32 0, 0
    %p57 = scmp.lt.s32.totalorder %s56, 0
    %s58 = scalar_select %p57, %s56, 0
    %s59 = smul.u32 2, %s58
    %p60 = scmp.eq.s32.totalorder 0, 0
    // Predicated region
    $region18: #{tpu_custom_call.1} parent=1 // pred_check
      %p61 = pneg %p60
    $region19: #{tpu_custom_call.1} parent=1 // pred_check_branch
      %63 = sbr.rel (%p61) target = $region21
    $region20: #{tpu_custom_call.1} parent=1 // pred_region
      %64 = vst [vmem:[#allocation7] sm:$0xff] 0.0
    $region21: #{tpu_custom_call.1} parent=1 // pred_fallthru
      _
    %v65 = vld [vmem:[#allocation2] sm:$0xff]
    %v66 = vld [vmem:[#allocation2 + $0x8] sm:$0xff]
    %v67 = vld [vmem:[#allocation5] sm:$0xff]
    %v68 = vld [vmem:[#allocation5 + $0x8] sm:$0xff]
    %v69 = vsub.f32 %v65, %v67
    %v70 = vsub.f32 %v66, %v68
    %v71 = vmul.f32 %v69, %v69
    %v72 = vmul.f32 %v70, %v70
    %v73 = vadd.f32 %v71, %v72
    %v74 = vadd.f32 %v73, 0.0
    %v75 = vld [vmem:[#allocation7] sm:$0xff]
    %v76 = vadd.f32 %v75, %v74
    %77 = vst [vmem:[#allocation7] sm:$0xff] %v76
    // Predicated region
    $region22: #{tpu_custom_call.1} parent=1 // pred_check
      _
    $region23: #{tpu_custom_call.1} parent=1 // pred_check_branch
      %79 = sbr.rel (0) target = $region25
    $region24: #{tpu_custom_call.1} parent=1 // pred_region
      %s81 = ssub.s32 128, 128
      %82 = vsyncadd [#allocation4], %s81
      %s84 = sshll.u32 [#allocation7], 4
      %s85 = int_to_ptr.vmem [resolvable:$true] %s84
      %87 = dma.vmem_to_hbm [thread:$0]  %s85, 128, %s2, [#allocation4]
    $region25: #{tpu_custom_call.1} parent=1 // pred_fallthru
      _
    // Predicated region
    $region26: #{tpu_custom_call.1} parent=1 // pred_check
      _
    $region27: #{tpu_custom_call.1} parent=1 // pred_check_branch
      %89 = sbr.rel (0) target = $region29
    $region28: #{tpu_custom_call.1} parent=1 // pred_region
      %90 = dma.done [#allocation4], 128
    $region29: #{tpu_custom_call.1} parent=1 // pred_fallthru
      _
    %91 = vsyncpa [#allocation3], 1
    %92 = vsyncpa [#allocation6], 1
    %93 = vsyncpa [#allocation4], 1

</llo_original>
